<compile_context>
chip_gen: v7x
topology: tpu7x:2x2x1
jax: 0.10.0
libtpu: 0.0.40
codegen_flags: <defaults>
</compile_context>

<pallas_src>
import functools
import math

import jax
import jax.numpy as jnp
from jax.experimental import pallas as pl
from jax.experimental.pallas import tpu as pltpu

_LANE = 128
_SUBLANE = 8
_NUM_CORES = 2  # pass-1 reduction split; engages both v7x TCs, harmless on 1-TC chips
_PREFERRED_LANE_MULTIPLES = (8, 16, 4, 32, 2, 64, 1)  # cols = 128*k preference (1024 first)


def _vmem_capacity_bytes():
    """Per-TensorCore VMEM capacity, with a generation-aware fallback."""
    try:
        return int(pltpu.get_tpu_info().vmem_capacity_bytes)
    except Exception:
        pass
    try:
        kind = jax.devices()[0].device_kind.lower()
    except Exception:
        kind = ""
    if "v7" in kind:
        return 64 * 1024 * 1024
    if any(g in kind for g in ("v4", "v5", "v6")):
        return 128 * 1024 * 1024
    return 64 * 1024 * 1024  # conservative for unknown generations


def _round_up(n, m):
    return ((n + m - 1) // m) * m


def _pick_cols(total):
    """A lane-dense width (multiple of 128) dividing `total` exactly, or None."""
    for k in _PREFERRED_LANE_MULTIPLES:
        cols = _LANE * k
        if total % cols == 0:
            return cols
    return None


def _to_lane_dense_2d(flat, total):
    """Free (bitcast) reshape to a lane-dense 2-D view; pad only if unavoidable."""
    cols = _pick_cols(total)
    if cols is not None:
        rows = total // cols
        return flat.reshape(rows, cols), rows, cols, False
    # Rare fallback (no 128-multiple divisor): pad to the minimal lane
    # granularity (<=127 zero elements).  Zero padding does not bias the sum.
    padded = _round_up(total, _LANE)
    flat = jnp.pad(flat, (0, padded - total))
    cols = _pick_cols(padded) or _LANE
    rows = padded // cols
    return flat.reshape(rows, cols), rows, cols, True


# ----------------------------- resident path ------------------------------- #
def _resident_kernel(x_ref, o_ref, *, inv_n):
    # Whole array in one VMEM block: 1 HBM read + 1 write, mean + subtract fused.
    # f32 accumulation; no explicit full-width f32 temporary for sub-32-bit dtypes.
    mean = jnp.sum(x_ref[...], dtype=jnp.float32) * jnp.float32(inv_n)
    o_ref[...] = x_ref[...] - mean.astype(o_ref.dtype)


# ----------------------------- tiled two-pass ------------------------------ #
def _partial_sum_kernel(x_ref, sums_ref, acc_ref, *, tiles_per_core, num_tiles,
                        valid_rows, tile_r, lane_chunks):
    c = pl.program_id(0)  # "parallel": split across TensorCores on v7x
    i = pl.program_id(1)  # "arbitrary": sequential reduction steps

    @pl.when(i == 0)
    def _():
        acc_ref[...] = jnp.zeros_like(acc_ref)

    # Global tile index for this step.  The index_map clamps it to the last
    # valid tile, so mask out both the OOB rows of a partial block and any
    # duplicated clamped tile (Pallas gives no guarantee about OOB block data).
    t = c * tiles_per_core + i
    row0 = jnp.minimum(t, num_tiles - 1) * tile_r
    row_ids = row0 + jax.lax.broadcasted_iota(jnp.int32, (tile_r, _LANE), 0)
    valid = (row_ids < valid_rows) & (t < num_tiles)

    part = jnp.zeros((tile_r, _LANE), jnp.float32)
    for k in range(lane_chunks):  # static 128-aligned lane slices, f32 accumulate
        part = part + x_ref[:, k * _LANE:(k + 1) * _LANE].astype(jnp.float32)
    acc_ref[...] += jnp.where(valid, part, 0.0)

    # Fused finalization: per-core partial sum written once as a lane vector,
    # so there is no separate XLA reduction between the two passes.
    @pl.when(i == tiles_per_core - 1)
    def _():
        sums_ref[...] = jnp.sum(acc_ref[...], axis=0, keepdims=True)[None]


def _subtract_kernel(sums_ref, x_ref, o_ref, *, inv_n):
    # Finish the mean from the tiny per-core sums and subtract elementwise.
    mean = jnp.sum(sums_ref[...]) * jnp.float32(inv_n)
    o_ref[...] = x_ref[...] - mean.astype(o_ref.dtype)


# -------------------------------- wrapper ----------------------------------- #
def centered_layer(x, *, force_tiled=False):
    """X - X.mean() over all elements (torch CenteredLayer semantics, float dtypes)."""
    orig_shape = x.shape
    dtype = x.dtype
    total = math.prod(orig_shape)
    if total == 0:
        return x

    itemsize = jnp.dtype(dtype).itemsize
    vmem_cap = _vmem_capacity_bytes()
    inv_n = 1.0 / total

    x2d, rows, cols, padded = _to_lane_dense_2d(x.reshape(-1), total)

    # Resident crossover: in + out (worst-case double-buffered) plus an f32
    # accumulation margin for sub-32-bit dtypes, kept well under per-TC VMEM.
    per_elem_bytes = 2 * itemsize + (4 if itemsize < 4 else 0)
    resident = (not force_tiled) and (total * per_elem_bytes <= (vmem_cap * 3) // 8)

    if resident:
        out2d = pl.pallas_call(
            functools.partial(_resident_kernel, inv_n=inv_n),
            out_shape=jax.ShapeDtypeStruct((rows, cols), dtype),
            grid=(1,),
            in_specs=[pl.BlockSpec((rows, cols), lambda i: (0, 0))],
            out_specs=pl.BlockSpec((rows, cols), lambda i: (0, 0)),
            compiler_params=pltpu.CompilerParams(
                dimension_semantics=("arbitrary",),
                vmem_limit_bytes=(vmem_cap * 7) // 8,
            ),
        )(x2d)
    else:
        # ---------------- tiled two-pass path (large inputs) ----------------
        target_tile_bytes = vmem_cap // 16  # ~4 MiB on v7x, ~8 MiB on v5e/v6e
        tile_r = max(_SUBLANE,
                     (target_tile_bytes // (cols * itemsize)) // _SUBLANE * _SUBLANE)
        if tile_r >= rows:
            tile_r = rows  # full-dim row block (legal for any row count)
        num_tiles = pl.cdiv(rows, tile_r)
        tiles_per_core = pl.cdiv(num_tiles, _NUM_CORES)
        lane_chunks = cols // _LANE
        vmem_limit = (vmem_cap * 3) // 4

        def _x_index(c, i):
            return (jnp.minimum(c * tiles_per_core + i, num_tiles - 1), 0)

        # Pass 1: per-core partial sums.  Core axis "parallel" (v7x: both TCs
        # stream half the tiles each), reduction axis "arbitrary".
        sums = pl.pallas_call(
            functools.partial(
                _partial_sum_kernel, tiles_per_core=tiles_per_core,
                num_tiles=num_tiles, valid_rows=rows, tile_r=tile_r,
                lane_chunks=lane_chunks),
            out_shape=jax.ShapeDtypeStruct((_NUM_CORES, 1, _LANE), jnp.float32),
            grid=(_NUM_CORES, tiles_per_core),
            in_specs=[pl.BlockSpec((tile_r, cols), _x_index)],
            out_specs=pl.BlockSpec((1, 1, _LANE), lambda c, i: (c, 0, 0)),
            scratch_shapes=[pltpu.VMEM((tile_r, _LANE), jnp.float32)],
            compiler_params=pltpu.CompilerParams(
                dimension_semantics=("parallel", "arbitrary"),
                vmem_limit_bytes=vmem_limit,
            ),
        )(x2d)

        # Pass 2: elementwise subtract; mean is finished in-kernel from the
        # tiny per-core sums (1/N folded in as a static scalar).
        out2d = pl.pallas_call(
            functools.partial(_subtract_kernel, inv_n=inv_n),
            out_shape=jax.ShapeDtypeStruct((rows, cols), dtype),
            grid=(num_tiles,),
            in_specs=[
                pl.BlockSpec((_NUM_CORES, 1, _LANE), lambda i: (0, 0, 0)),
                pl.BlockSpec((tile_r, cols), lambda i: (i, 0)),
            ],
            out_specs=pl.BlockSpec((tile_r, cols), lambda i: (i, 0)),
            compiler_params=pltpu.CompilerParams(
                dimension_semantics=("parallel",),
                vmem_limit_bytes=vmem_limit,
            ),
        )(sums, x2d)

    out_flat = out2d.reshape(-1)
    if padded:
        out_flat = out_flat[:total]  # only for the rare minimal-pad fallback
    return out_flat.reshape(orig_shape)


if __name__ == "__main__":
    key = jax.random.PRNGKey(0)
    # Small NCHW input consistent with a conv-style pipeline: (B=2, C=4, H=16, W=16)
    x = jax.random.normal(key, (2, 4, 16, 16), dtype=jnp.float32)

    y = jax.block_until_ready(centered_layer(x))
    y_ref = x - jnp.mean(x)
    assert y.shape == x.shape and y.dtype == x.dtype
    assert jnp.allclose(y, y_ref, atol=1e-5, rtol=1e-5)
    assert abs(float(jnp.mean(y))) < 1e-5

    # Also exercise the tiled two-pass path (auto-selected for large inputs).
    y2 = jax.block_until_ready(centered_layer(x, force_tiled=True))
    assert y2.shape == x.shape and y2.dtype == x.dtype
    assert jnp.allclose(y2, y_ref, atol=1e-5, rtol=1e-5)

    print("KERNEL_OK")
</pallas_src>

<mosaic_0001>
module attributes {stable_mosaic.version = 11 : i64} {
  func.func @_resident_kernel(%arg0: i32, %arg1: memref<2x1024xf32, #tpu.memory_space<vmem>>, %arg2: memref<2x1024xf32, #tpu.memory_space<vmem>>) attributes {dimension_semantics = [#tpu.dimension_semantics<arbitrary>], iteration_bounds = array<i64: 1>, scalar_prefetch = 0 : i64, scratch_operands = 0 : i64, tpu.core_type = #tpu.core_type<tc>, window_params = [{pipeline_mode = #tpu.pipeline_mode<synchronous>, transform_indices = @transform_0, window_bounds = array<i64: 2, 1024>}, {pipeline_mode = #tpu.pipeline_mode<synchronous>, transform_indices = @transform_1, window_bounds = array<i64: 2, 1024>}]} {
    %c0 = arith.constant 0 : index
    %c0_0 = arith.constant 0 : index
    %0 = vector.load %arg1[%c0, %c0_0] : memref<2x1024xf32, #tpu.memory_space<vmem>>, vector<2x1024xf32>
    %1 = vector.shape_cast %0 : vector<2x1024xf32> to vector<1x2x1024xf32>
    %cst = arith.constant dense<0.000000e+00> : vector<1xf32>
    %2 = vector.multi_reduction <add>, %1, %cst [1, 2] : vector<1x2x1024xf32> to vector<1xf32>
    %3 = vector.shape_cast %2 : vector<1xf32> to vector<1x1x1xf32>
    %4 = vector.extract %3[0, 0, 0] : f32 from vector<1x1x1xf32>
    %cst_1 = arith.constant 4.8828125E-4 : f32
    %5 = arith.mulf %4, %cst_1 : f32
    %c0_2 = arith.constant 0 : index
    %c0_3 = arith.constant 0 : index
    %6 = vector.load %arg1[%c0_2, %c0_3] : memref<2x1024xf32, #tpu.memory_space<vmem>>, vector<2x1024xf32>
    %7 = vector.broadcast %5 : f32 to vector<2x1024xf32>
    %8 = arith.subf %6, %7 : vector<2x1024xf32>
    %c0_4 = arith.constant 0 : index
    %c0_5 = arith.constant 0 : index
    %9 = vector.load %arg2[%c0_4, %c0_5] : memref<2x1024xf32, #tpu.memory_space<vmem>>, vector<2x1024xf32>
    tpu.vector_store %arg2[%c0_4, %c0_5], %8 {strides = array<i32>} : memref<2x1024xf32, #tpu.memory_space<vmem>>, vector<2x1024xf32>,
    return
  }
  func.func @transform_0(%arg0: i32) -> (i32, i32) {
    %c0_i32 = arith.constant 0 : i32
    %c0_i32_0 = arith.constant 0 : i32
    %c0_i32_1 = arith.constant 0 : i32
    return %c0_i32, %c0_i32_0 : i32, i32
  }
  func.func @transform_1(%arg0: i32) -> (i32, i32) {
    %c0_i32 = arith.constant 0 : i32
    %c0_i32_0 = arith.constant 0 : i32
    %c0_i32_1 = arith.constant 0 : i32
    return %c0_i32, %c0_i32_0 : i32, i32
  }
}

</mosaic_0001>

<llo_original>
// kernel: tpu_custom_call.1
$region0: #{tpu_custom_call.1}
  #allocation0 [shape = 'u32[]', space=smem, size = 0x4, offset = 0x4, fixed_abs, tag = 'smem constant byte address 0x4 - core index']
  #allocation1 [shape = 'u32[144,128]{1,0:T(1,128)}', space=vmem, size = 0x12000, scoped, tag = 'internal scratch']
  %s0 = inlined_call_operand.hbm [shape: f32[2,1024], index: 0, kind: input, shape index: {}]
  %s1 = inlined_call_operand.hbm [shape: f32[2,1024], index: 1, kind: output, shape index: {}]
  %s2 = sld [smem:[#allocation0]]
  $region18: #{tpu_custom_call.1} parent=0
    _
  %s4 = ssub.s32 1, %s2
  %s5 = scalar_select 0, %s4, %s2
  $region1: #{tpu_custom_call.1} parent=0
    #allocation2 [shape = 'u8[8192]{0}', space=vmem, size = 0x2000, scoped, tag = 'input window, operand 0, single buffered']
    #allocation3 [shape = 's32[1]{0}', space=sflag, size = 0x4, scoped, tag = 'scoped memory for tpu_custom_call.1']
    #allocation4 [shape = 's32[1]{0}', space=sflag, size = 0x4, scoped, tag = 'scoped memory for tpu_custom_call.1']
    #allocation5 [shape = 'u8[8192]{0}', space=vmem, size = 0x2000, scoped, tag = 'output window, operand 0, single buffered']
    %6 = vsyncpa [#allocation3], 0
    %7 = vsyncpa [#allocation4], 0
    // Predicated region
    $region2: #{tpu_custom_call.1} parent=1 // pred_check
      _
    $region3: #{tpu_custom_call.1} parent=1 // pred_check_branch
      %9 = sbr.rel (0) target = $region5
    $region4: #{tpu_custom_call.1} parent=1 // pred_region
      %s11 = ssub.s32 256, 256
      %12 = vsyncadd [#allocation3], %s11
      %s14 = sshll.u32 [#allocation2], 4
      %s15 = int_to_ptr.vmem [resolvable:$true] %s14
      %17 = dma.hbm_to_vmem [thread:$0]  %s0, 256, %s15, [#allocation3]
    $region5: #{tpu_custom_call.1} parent=1 // pred_fallthru
      _
    // Predicated region
    $region6: #{tpu_custom_call.1} parent=1 // pred_check
      _
    $region7: #{tpu_custom_call.1} parent=1 // pred_check_branch
      %19 = sbr.rel (0) target = $region9
    $region8: #{tpu_custom_call.1} parent=1 // pred_region
      %20 = dma.done [#allocation3], 256
    $region9: #{tpu_custom_call.1} parent=1 // pred_fallthru
      _
    %v21 = vld [vmem:[#allocation2] sm:$0xff]
    %v22 = vld [vmem:[#allocation2 + $0x8] sm:$0xff]
    %v25 = vcombine.high %v21, %v21
    %v27 = vunpack.c.l.s4 1983009808
    %v28 = vunpack.c.0.s8 %v27
    %v29 = vlaneseq
    %v30 = vshrl.u32 %v29, 7
    %v31 = vsub.s32 %v28, %v30
    %v32 = vrot.slane %v21, %v31
    %v34 = vunpack.c.l.s4 1983009808
    %v35 = vunpack.c.0.s8 %v34
    %v36 = vlaneseq
    %v37 = vshrl.u32 %v36, 7
    %v38 = vsub.s32 %v35, %v37
    %v39 = vrot.slane %v25, %v38
    %v40 = vcombine.high %v32, %v32
    %v41 = vcombine.high %v39, %v39
    %v42 = vcombine.high %v22, %v22
    %v44 = vunpack.c.l.s4 1983009808
    %v45 = vunpack.c.0.s8 %v44
    %v46 = vlaneseq
    %v47 = vshrl.u32 %v46, 7
    %v48 = vsub.s32 %v45, %v47
    %v49 = vrot.slane %v22, %v48
    %v51 = vunpack.c.l.s4 1983009808
    %v52 = vunpack.c.0.s8 %v51
    %v53 = vlaneseq
    %v54 = vshrl.u32 %v53, 7
    %v55 = vsub.s32 %v52, %v54
    %v56 = vrot.slane %v42, %v55
    %v57 = vcombine.high %v49, %v49
    %v58 = vcombine.high %v56, %v56
    %vm67 = vcmask 1041408
    %v68 = vsel %vm67, %v32, 0.0
    %v69 = vsel %vm67, %v40, 0.0
    %v70 = vadd.f32 %v68, %v69
    %v71 = vsel %vm67, %v39, 0.0
    %v72 = vadd.f32 %v70, %v71
    %v73 = vsel %vm67, %v41, 0.0
    %v74 = vadd.f32 %v72, %v73
    %v75 = vsel %vm67, %v49, 0.0
    %v76 = vadd.f32 %v74, %v75
    %v77 = vsel %vm67, %v57, 0.0
    %v78 = vadd.f32 %v76, %v77
    %v79 = vsel %vm67, %v56, 0.0
    %v80 = vadd.f32 %v78, %v79
    %v81 = vsel %vm67, %v58, 0.0
    %v82 = vadd.f32 %v80, %v81
    %83 = vadd.xlane.f32.xlu0 %v82
    %v84 = vpop.xlane.xlu0 %83
    %v85 = vrot.slane %v84, 4
    %v86 = vadd.f32 %v84, %v85
    %v87 = vrot.slane %v86, 2
    %v88 = vadd.f32 %v86, %v87
    %v89 = vrot.slane %v88, 1
    %v90 = vadd.f32 %v88, %v89
    %s91 = vtos %v90
    %s92 = smul.f32 %s91, 0.00048828125
    %v93 = vstv %s92
    %v94 = vsub.f32 %v21, %v93
    %v95 = vsub.f32 %v22, %v93
    %96 = vst [vmem:[#allocation5] sm:$0xff] %v94
    %97 = vst [vmem:[#allocation5 + $0x8] sm:$0xff] %v95
    // Predicated region
    $region10: #{tpu_custom_call.1} parent=1 // pred_check
      _
    $region11: #{tpu_custom_call.1} parent=1 // pred_check_branch
      %99 = sbr.rel (0) target = $region13
    $region12: #{tpu_custom_call.1} parent=1 // pred_region
      %s101 = ssub.s32 256, 256
      %102 = vsyncadd [#allocation4], %s101
      %s104 = sshll.u32 [#allocation5], 4
      %s105 = int_to_ptr.vmem [resolvable:$true] %s104
      %107 = dma.vmem_to_hbm [thread:$0]  %s105, 256, %s1, [#allocation4]
    $region13: #{tpu_custom_call.1} parent=1 // pred_fallthru
      _
    // Predicated region
    $region14: #{tpu_custom_call.1} parent=1 // pred_check
      _
    $region15: #{tpu_custom_call.1} parent=1 // pred_check_branch
      %109 = sbr.rel (0) target = $region17
    $region16: #{tpu_custom_call.1} parent=1 // pred_region
      %110 = dma.done [#allocation4], 256
    $region17: #{tpu_custom_call.1} parent=1 // pred_fallthru
      _
    %111 = vsyncpa [#allocation3], 1
    %112 = vsyncpa [#allocation4], 1

</llo_original>
